<compile_context>
chip_gen: v7x
topology: tpu7x:2x2x1
jax: 0.10.0
libtpu: 0.0.40
codegen_flags: <defaults>
</compile_context>

<pallas_src>
import jax
import jax.numpy as jnp
from jax.experimental import pallas as pl
from jax.experimental.pallas import tpu as pltpu


def _round_up(x, m):
    return ((x + m - 1) // m) * m


def net_kernel(xT_ref, w1T_ref, w2T_ref, oT_ref):
    """One batch tile of exp( w2T @ ReLU( w1T @ xT ) ), batch on the lane axis.

    xT_ref : (1+F, TB)  transposed [z, y] input tile (pipelined over batch)
    w1T_ref: (H, 1+F)   first-linear weight, resident
    w2T_ref: (1, H)     second-linear weight row, resident
    oT_ref : (1, TB)    lane-dense output row
    """
    # First linear: (H, 1+F) @ (1+F, TB) -> (H, TB) on the MXU (K = 1+F <= 128
    # is already paid for, so the y row rides along for free).
    hT = jnp.dot(w1T_ref[...], xT_ref[...], preferred_element_type=jnp.float32)
    hT = jnp.maximum(hT, 0.0)                                   # ReLU
    # Second linear as an M=1, K=H MXU matmul -> lane-dense (1, TB) result,
    # instead of a cross-lane (XLU) reduce per row.
    outT = jnp.dot(w2T_ref[...], hT, preferred_element_type=jnp.float32)
    oT_ref[...] = jnp.exp(outT).astype(oT_ref.dtype)            # torch.exp


def net_forward(y, z, w1, w2, *, tb=2048):
    """y: (B, 1), z: (B, F), w1: (1+F, H) (transposed nn.Linear weight),
    w2: (H, 1) (transposed nn.Linear weight) -> (B, 1)."""
    B, F = z.shape
    in_feat, H = w1.shape
    assert in_feat == F + 1 and w2.shape == (H, 1)

    # Layout plumbing (fused by XLA into one pass): batch goes on the lane axis.
    xT = jnp.concatenate([z, y], axis=1).T        # (1+F, B), concat order [z, y]
    w1T = w1.T                                    # (H, 1+F)
    w2T = w2.T                                    # (1, H)

    # Tile selection: lane axis must be a multiple of 128; collapse to a single
    # grid step whenever the whole (padded) batch fits one tile.
    tb = max(128, _round_up(tb, 128))
    TB = min(tb, _round_up(B, 128))
    B_pad = _round_up(B, TB)
    if B_pad != B:
        # Padded columns are zeros -> exp(0)=1, sliced off below.
        xT = jnp.pad(xT, ((0, 0), (0, B_pad - B)))

    grid = (B_pad // TB,)

    outT = pl.pallas_call(
        net_kernel,
        out_shape=jax.ShapeDtypeStruct((1, B_pad), jnp.float32),
        grid=grid,
        in_specs=[
            pl.BlockSpec((in_feat, TB), lambda i: (0, i)),   # xT tile (pipelined)
            pl.BlockSpec((H, in_feat), lambda i: (0, 0)),    # w1T resident
            pl.BlockSpec((1, H), lambda i: (0, 0)),          # w2T resident
        ],
        out_specs=pl.BlockSpec((1, TB), lambda i: (0, i)),   # lane-dense output
        compiler_params=pltpu.CompilerParams(
            dimension_semantics=("parallel",),               # megacore / 2-TC sharding
        ),
    )(xT, w1T, w2T)

    return outT[0, :B].reshape(B, 1)


def reference_forward(y, z, w1, w2):
    x = jnp.concatenate([z, y], axis=1)
    h = jnp.maximum(x @ w1, 0.0)
    return jnp.exp(h @ w2)


if __name__ == "__main__":
    num_features = 7          # -> in_features = 1 + 7 = 8
    batch = 200               # not a multiple of 128; padded to 256, single tile
    hidden = 128

    key = jax.random.PRNGKey(0)
    k_y, k_z, k_w1, k_w2 = jax.random.split(key, 4)

    y = jax.random.normal(k_y, (batch, 1), dtype=jnp.float32)
    z = jax.random.normal(k_z, (batch, num_features), dtype=jnp.float32)

    # Deterministic weights; shapes match nn.Linear(1+F,128,bias=False) /
    # nn.Linear(128,1,bias=False) stored transposed so the math is x @ W.
    in_feat = 1 + num_features
    w1 = jax.random.normal(k_w1, (in_feat, hidden), dtype=jnp.float32) * (1.0 / jnp.sqrt(in_feat))
    w2 = jax.random.normal(k_w2, (hidden, 1), dtype=jnp.float32) * (1.0 / jnp.sqrt(hidden))

    out = net_forward(y, z, w1, w2)           # TB=256, grid=(1,): single step
    out = jax.block_until_ready(out)

    ref = reference_forward(y, z, w1, w2)
    assert out.shape == (batch, 1)
    assert jnp.allclose(out, ref, rtol=1e-5, atol=1e-5), float(jnp.max(jnp.abs(out - ref)))

    print("KERNEL_OK")
</pallas_src>

<mosaic_0001>
module attributes {stable_mosaic.version = 11 : i64} {
  func.func @net_kernel(%arg0: i32, %arg1: memref<8x256xf32, #tpu.memory_space<vmem>>, %arg2: memref<128x8xf32, #tpu.memory_space<vmem>>, %arg3: memref<1x128xf32, #tpu.memory_space<vmem>>, %arg4: memref<1x256xf32, #tpu.memory_space<vmem>>) attributes {dimension_semantics = [#tpu.dimension_semantics<parallel>], iteration_bounds = array<i64: 1>, scalar_prefetch = 0 : i64, scratch_operands = 0 : i64, tpu.core_type = #tpu.core_type<tc>, window_params = [{transform_indices = @transform_0, window_bounds = array<i64: 8, 256>}, {pipeline_mode = #tpu.pipeline_mode<synchronous>, transform_indices = @transform_1, window_bounds = array<i64: 128, 8>}, {pipeline_mode = #tpu.pipeline_mode<synchronous>, transform_indices = @transform_2, window_bounds = array<i64: 1, 128>}, {transform_indices = @transform_3, window_bounds = array<i64: 1, 256>}]} {
    %c0 = arith.constant 0 : index
    %c0_0 = arith.constant 0 : index
    %0 = vector.load %arg2[%c0, %c0_0] : memref<128x8xf32, #tpu.memory_space<vmem>>, vector<128x8xf32>
    %c0_1 = arith.constant 0 : index
    %c0_2 = arith.constant 0 : index
    %1 = vector.load %arg1[%c0_1, %c0_2] : memref<8x256xf32, #tpu.memory_space<vmem>>, vector<8x256xf32>
    %cst = arith.constant dense<0.000000e+00> : vector<128x256xf32>
    %2 = tpu.matmul %0, %1, %cst {dimension_numbers = #tpu.dot_dimension_numbers<[1], [0], [0], [1], [0, 0, 1, 1], [], []>} : vector<128x8xf32>, vector<8x256xf32>, vector<128x256xf32> -> vector<128x256xf32>
    %cst_3 = arith.constant 0.000000e+00 : f32
    %3 = vector.broadcast %cst_3 : f32 to vector<128x256xf32>
    %4 = arith.maximumf %2, %3 : vector<128x256xf32>
    %c0_4 = arith.constant 0 : index
    %c0_5 = arith.constant 0 : index
    %5 = vector.load %arg3[%c0_4, %c0_5] : memref<1x128xf32, #tpu.memory_space<vmem>>, vector<1x128xf32>
    %cst_6 = arith.constant dense<0.000000e+00> : vector<1x256xf32>
    %6 = tpu.matmul %5, %4, %cst_6 {dimension_numbers = #tpu.dot_dimension_numbers<[1], [0], [0], [1], [0, 0, 1, 1], [], []>} : vector<1x128xf32>, vector<128x256xf32>, vector<1x256xf32> -> vector<1x256xf32>
    %7 = math.exp %6 : vector<1x256xf32>
    %c0_7 = arith.constant 0 : index
    %c0_8 = arith.constant 0 : index
    %8 = vector.load %arg4[%c0_7, %c0_8] : memref<1x256xf32, #tpu.memory_space<vmem>>, vector<1x256xf32>
    tpu.vector_store %arg4[%c0_7, %c0_8], %7 {strides = array<i32>} : memref<1x256xf32, #tpu.memory_space<vmem>>, vector<1x256xf32>,
    return
  }
  func.func @transform_0(%arg0: i32) -> (i32, i32) {
    %c0_i32 = arith.constant 0 : i32
    %c0_i32_0 = arith.constant 0 : i32
    return %c0_i32, %arg0 : i32, i32
  }
  func.func @transform_1(%arg0: i32) -> (i32, i32) {
    %c0_i32 = arith.constant 0 : i32
    %c0_i32_0 = arith.constant 0 : i32
    %c0_i32_1 = arith.constant 0 : i32
    return %c0_i32, %c0_i32_0 : i32, i32
  }
  func.func @transform_2(%arg0: i32) -> (i32, i32) {
    %c0_i32 = arith.constant 0 : i32
    %c0_i32_0 = arith.constant 0 : i32
    %c0_i32_1 = arith.constant 0 : i32
    return %c0_i32, %c0_i32_0 : i32, i32
  }
  func.func @transform_3(%arg0: i32) -> (i32, i32) {
    %c0_i32 = arith.constant 0 : i32
    %c0_i32_0 = arith.constant 0 : i32
    return %c0_i32, %arg0 : i32, i32
  }
}

</mosaic_0001>

<llo_original>
// kernel: tpu_custom_call.1
$region0: #{tpu_custom_call.1}
  #allocation0 [shape = 'u32[]', space=smem, size = 0x4, offset = 0x4, fixed_abs, tag = 'smem constant byte address 0x4 - core index']
  #allocation1 [shape = 'u32[144,128]{1,0:T(1,128)}', space=vmem, size = 0x12000, scoped, tag = 'internal scratch']
  %s0 = inlined_call_operand.vmem [shape: f32[8,256], index: 0, kind: input, shape index: {}]
  %s1 = inlined_call_operand.vmem [shape: f32[128,8], index: 1, kind: input, shape index: {}]
  %s2 = inlined_call_operand.vmem [shape: f32[1,128], index: 2, kind: input, shape index: {}]
  %s3 = inlined_call_operand.hbm [shape: f32[1,256], index: 3, kind: output, shape index: {}]
  %s4 = sld [smem:[#allocation0]]
  $region22: #{tpu_custom_call.1} parent=0
    _
  %s6 = ssub.s32 1, %s4
  %s7 = scalar_select 0, %s6, %s4
  $region1: #{tpu_custom_call.1} parent=0
    #allocation2 [shape = 'u8[1024]{0}', space=vmem, size = 0x400, scoped, tag = 'output window, operand 0, single buffered']
    #allocation3 [shape = 's32[1]{0}', space=sflag, size = 0x4, scoped, tag = 'scoped memory for tpu_custom_call.1']
    %8 = vsyncpa [#allocation3], 0
    // Predicated region
    $region2: #{tpu_custom_call.1} parent=1 // pred_check
      _
    $region3: #{tpu_custom_call.1} parent=1 // pred_check_branch
      %10 = sbr.rel (0) target = $region5
    $region4: #{tpu_custom_call.1} parent=1 // pred_region
      _
    $region5: #{tpu_custom_call.1} parent=1 // pred_fallthru
      _
    // Predicated region
    $region6: #{tpu_custom_call.1} parent=1 // pred_check
      _
    $region7: #{tpu_custom_call.1} parent=1 // pred_check_branch
      %12 = sbr.rel (0) target = $region9
    $region8: #{tpu_custom_call.1} parent=1 // pred_region
      _
    $region9: #{tpu_custom_call.1} parent=1 // pred_fallthru
      _
    // Predicated region
    $region10: #{tpu_custom_call.1} parent=1 // pred_check
      _
    $region11: #{tpu_custom_call.1} parent=1 // pred_check_branch
      %14 = sbr.rel (0) target = $region13
    $region12: #{tpu_custom_call.1} parent=1 // pred_region
      _
    $region13: #{tpu_custom_call.1} parent=1 // pred_fallthru
      _
    %v15 = vld [vmem:[%s1] sm:$0xff]
    %v16 = vld [vmem:[%s1 + $0x8] sm:$0xff]
    %v17 = vld [vmem:[%s1 + $0x10] sm:$0xff]
    %v18 = vld [vmem:[%s1 + $0x18] sm:$0xff]
    %v19 = vld [vmem:[%s1 + $0x20] sm:$0xff]
    %v20 = vld [vmem:[%s1 + $0x28] sm:$0xff]
    %v21 = vld [vmem:[%s1 + $0x30] sm:$0xff]
    %v22 = vld [vmem:[%s1 + $0x38] sm:$0xff]
    %v23 = vld [vmem:[%s1 + $0x40] sm:$0xff]
    %v24 = vld [vmem:[%s1 + $0x48] sm:$0xff]
    %v25 = vld [vmem:[%s1 + $0x50] sm:$0xff]
    %v26 = vld [vmem:[%s1 + $0x58] sm:$0xff]
    %v27 = vld [vmem:[%s1 + $0x60] sm:$0xff]
    %v28 = vld [vmem:[%s1 + $0x68] sm:$0xff]
    %v29 = vld [vmem:[%s1 + $0x70] sm:$0xff]
    %v30 = vld [vmem:[%s1 + $0x78] sm:$0xff]
    %v31 = vld [vmem:[%s0] sm:$0xff]
    %v32 = vld [vmem:[%s0 + $0x8] sm:$0xff]
    %vm33 = vcmask 64512
    %v35 = vsel %vm33, %v15, 0
    %v38 = vsel %vm33, %v16, 0
    %v41 = vsel %vm33, %v17, 0
    %v44 = vsel %vm33, %v18, 0
    %v47 = vsel %vm33, %v19, 0
    %v50 = vsel %vm33, %v20, 0
    %v53 = vsel %vm33, %v21, 0
    %v56 = vsel %vm33, %v22, 0
    %v59 = vsel %vm33, %v23, 0
    %v62 = vsel %vm33, %v24, 0
    %v65 = vsel %vm33, %v25, 0
    %v68 = vsel %vm33, %v26, 0
    %v71 = vsel %vm33, %v27, 0
    %v74 = vsel %vm33, %v28, 0
    %v77 = vsel %vm33, %v29, 0
    %v80 = vsel %vm33, %v30, 0
    %82 = vmatprep.subr.mxu0 %v32
    %83 = vmatpush1.msra.mxu0 %v31
    %84 = vmatprep.subr.mxu0 0.0
    %85 = vmatpush1.msra.mxu0 0.0
    %86 = vmatprep.subr.mxu0 0.0
    %87 = vmatpush1.msra.mxu0 0.0
    %88 = vmatprep.subr.mxu0 0.0
    %89 = vmatpush1.msra.mxu0 0.0
    %90 = vmatprep.subr.mxu0 0.0
    %91 = vmatpush1.msra.mxu0 0.0
    %92 = vmatprep.subr.mxu0 0.0
    %93 = vmatpush1.msra.mxu0 0.0
    %94 = vmatprep.subr.mxu0 0.0
    %95 = vmatpush1.msra.mxu0 0.0
    %96 = vmatprep.subr.mxu0 0.0
    %97 = vmatpush1.msra.mxu0 0.0
    %98 = vmatprep.subr.mxu0 0.0
    %99 = vmatpush1.msra.mxu0 0.0
    %100 = vmatprep.subr.mxu0 0.0
    %101 = vmatpush1.msra.mxu0 0.0
    %102 = vmatprep.subr.mxu0 0.0
    %103 = vmatpush1.msra.mxu0 0.0
    %104 = vmatprep.subr.mxu0 0.0
    %105 = vmatpush1.msra.mxu0 0.0
    %106 = vmatprep.subr.mxu0 0.0
    %107 = vmatpush1.msra.mxu0 0.0
    %108 = vmatprep.subr.mxu0 0.0
    %109 = vmatpush1.msra.mxu0 0.0
    %110 = vmatprep.subr.mxu0 0.0
    %111 = vmatpush1.msra.mxu0 0.0
    %112 = vmatprep.subr.mxu0 0.0
    %113 = vmatpush1.msra.mxu0 0.0
    %114 = vmatprep.subr.mxu0 0.0
    %115 = vmatpush1.msra.mxu0 0.0
    %116 = vmatprep.subr.mxu0 0.0
    %117 = vmatpush1.msra.mxu0 0.0
    %118 = vmatprep.subr.mxu0 0.0
    %119 = vmatpush1.msra.mxu0 0.0
    %120 = vmatprep.subr.mxu0 0.0
    %121 = vmatpush1.msra.mxu0 0.0
    %122 = vmatprep.subr.mxu0 0.0
    %123 = vmatpush1.msra.mxu0 0.0
    %124 = vmatprep.subr.mxu0 0.0
    %125 = vmatpush1.msra.mxu0 0.0
    %126 = vmatprep.subr.mxu0 0.0
    %127 = vmatpush1.msra.mxu0 0.0
    %128 = vmatprep.subr.mxu0 0.0
    %129 = vmatpush1.msra.mxu0 0.0
    %130 = vmatprep.subr.mxu0 0.0
    %131 = vmatpush1.msra.mxu0 0.0
    %132 = vmatprep.subr.mxu0 0.0
    %133 = vmatpush1.msra.mxu0 0.0
    %134 = vmatprep.subr.mxu0 0.0
    %135 = vmatpush1.msra.mxu0 0.0
    %136 = vmatprep.subr.mxu0 0.0
    %137 = vmatpush1.msra.mxu0 0.0
    %138 = vmatprep.subr.mxu0 0.0
    %139 = vmatpush1.msra.mxu0 0.0
    %140 = vmatprep.subr.mxu0 0.0
    %141 = vmatpush1.msra.mxu0 0.0
    %142 = vmatprep.subr.mxu0 0.0
    %143 = vmatpush1.msra.mxu0 0.0
    %144 = vmatprep.subr.mxu0 0.0
    %145 = vmatpush1.msra.mxu0 0.0
    %146 = vmatprep.mubr.f32.mxu0 0.0
    %147 = vmatmul.mubr.f32.gmra.mrb[0].mxu0 %v35
    %v148 = vpop.f32.mrb[0].mxu0
    %v149 = vadd.f32 0.0, %v148
    %v150 = vpop.f32.mrb[0].mxu0
    %v151 = vadd.f32 0.0, %v150
    %152 = vmatprep.mubr.f32.mxu0 0.0
    %153 = vmatmul.mubr.f32.gmra.mrb[0].mxu0 %v38
    %v154 = vpop.f32.mrb[0].mxu0
    %v155 = vadd.f32 0.0, %v154
    %v156 = vpop.f32.mrb[0].mxu0
    %v157 = vadd.f32 0.0, %v156
    %158 = vmatprep.mubr.f32.mxu0 0.0
    %159 = vmatmul.mubr.f32.gmra.mrb[0].mxu0 %v41
    %v160 = vpop.f32.mrb[0].mxu0
    %v161 = vadd.f32 0.0, %v160
    %v162 = vpop.f32.mrb[0].mxu0
    %v163 = vadd.f32 0.0, %v162
    %164 = vmatprep.mubr.f32.mxu0 0.0
    %165 = vmatmul.mubr.f32.gmra.mrb[0].mxu0 %v44
    %v166 = vpop.f32.mrb[0].mxu0
    %v167 = vadd.f32 0.0, %v166
    %v168 = vpop.f32.mrb[0].mxu0
    %v169 = vadd.f32 0.0, %v168
    %170 = vmatprep.mubr.f32.mxu0 0.0
    %171 = vmatmul.mubr.f32.gmra.mrb[0].mxu0 %v47
    %v172 = vpop.f32.mrb[0].mxu0
    %v173 = vadd.f32 0.0, %v172
    %v174 = vpop.f32.mrb[0].mxu0
    %v175 = vadd.f32 0.0, %v174
    %176 = vmatprep.mubr.f32.mxu0 0.0
    %177 = vmatmul.mubr.f32.gmra.mrb[0].mxu0 %v50
    %v178 = vpop.f32.mrb[0].mxu0
    %v179 = vadd.f32 0.0, %v178
    %v180 = vpop.f32.mrb[0].mxu0
    %v181 = vadd.f32 0.0, %v180
    %182 = vmatprep.mubr.f32.mxu0 0.0
    %183 = vmatmul.mubr.f32.gmra.mrb[0].mxu0 %v53
    %v184 = vpop.f32.mrb[0].mxu0
    %v185 = vadd.f32 0.0, %v184
    %v186 = vpop.f32.mrb[0].mxu0
    %v187 = vadd.f32 0.0, %v186
    %188 = vmatprep.mubr.f32.mxu0 0.0
    %189 = vmatmul.mubr.f32.gmra.mrb[0].mxu0 %v56
    %v190 = vpop.f32.mrb[0].mxu0
    %v191 = vadd.f32 0.0, %v190
    %v192 = vpop.f32.mrb[0].mxu0
    %v193 = vadd.f32 0.0, %v192
    %194 = vmatprep.mubr.f32.mxu0 0.0
    %195 = vmatmul.mubr.f32.gmra.mrb[0].mxu0 %v59
    %v196 = vpop.f32.mrb[0].mxu0
    %v197 = vadd.f32 0.0, %v196
    %v198 = vpop.f32.mrb[0].mxu0
    %v199 = vadd.f32 0.0, %v198
    %200 = vmatprep.mubr.f32.mxu0 0.0
    %201 = vmatmul.mubr.f32.gmra.mrb[0].mxu0 %v62
    %v202 = vpop.f32.mrb[0].mxu0
    %v203 = vadd.f32 0.0, %v202
    %v204 = vpop.f32.mrb[0].mxu0
    %v205 = vadd.f32 0.0, %v204
    %206 = vmatprep.mubr.f32.mxu0 0.0
    %207 = vmatmul.mubr.f32.gmra.mrb[0].mxu0 %v65
    %v208 = vpop.f32.mrb[0].mxu0
    %v209 = vadd.f32 0.0, %v208
    %v210 = vpop.f32.mrb[0].mxu0
    %v211 = vadd.f32 0.0, %v210
    %212 = vmatprep.mubr.f32.mxu0 0.0
    %213 = vmatmul.mubr.f32.gmra.mrb[0].mxu0 %v68
    %v214 = vpop.f32.mrb[0].mxu0
    %v215 = vadd.f32 0.0, %v214
    %v216 = vpop.f32.mrb[0].mxu0
    %v217 = vadd.f32 0.0, %v216
    %218 = vmatprep.mubr.f32.mxu0 0.0
    %219 = vmatmul.mubr.f32.gmra.mrb[0].mxu0 %v71
    %v220 = vpop.f32.mrb[0].mxu0
    %v221 = vadd.f32 0.0, %v220
    %v222 = vpop.f32.mrb[0].mxu0
    %v223 = vadd.f32 0.0, %v222
    %224 = vmatprep.mubr.f32.mxu0 0.0
    %225 = vmatmul.mubr.f32.gmra.mrb[0].mxu0 %v74
    %v226 = vpop.f32.mrb[0].mxu0
    %v227 = vadd.f32 0.0, %v226
    %v228 = vpop.f32.mrb[0].mxu0
    %v229 = vadd.f32 0.0, %v228
    %230 = vmatprep.mubr.f32.mxu0 0.0
    %231 = vmatmul.mubr.f32.gmra.mrb[0].mxu0 %v77
    %v232 = vpop.f32.mrb[0].mxu0
    %v233 = vadd.f32 0.0, %v232
    %v234 = vpop.f32.mrb[0].mxu0
    %v235 = vadd.f32 0.0, %v234
    %236 = vmatprep.mubr.f32.mxu0 0.0
    %237 = vmatmul.mubr.f32.gmra.mrb[0].mxu0 %v80
    %v238 = vpop.f32.mrb[0].mxu0
    %v239 = vadd.f32 0.0, %v238
    %v240 = vpop.f32.mrb[0].mxu0
    %v241 = vadd.f32 0.0, %v240
    %242 = vdwg.mxu0
    %v243 = vmax.f32 %v149, 0.0
    %v244 = vmax.f32 %v151, 0.0
    %v245 = vmax.f32 %v155, 0.0
    %v246 = vmax.f32 %v157, 0.0
    %v247 = vmax.f32 %v161, 0.0
    %v248 = vmax.f32 %v163, 0.0
    %v249 = vmax.f32 %v167, 0.0
    %v250 = vmax.f32 %v169, 0.0
    %v251 = vmax.f32 %v173, 0.0
    %v252 = vmax.f32 %v175, 0.0
    %v253 = vmax.f32 %v179, 0.0
    %v254 = vmax.f32 %v181, 0.0
    %v255 = vmax.f32 %v185, 0.0
    %v256 = vmax.f32 %v187, 0.0
    %v257 = vmax.f32 %v191, 0.0
    %v258 = vmax.f32 %v193, 0.0
    %v259 = vmax.f32 %v197, 0.0
    %v260 = vmax.f32 %v199, 0.0
    %v261 = vmax.f32 %v203, 0.0
    %v262 = vmax.f32 %v205, 0.0
    %v263 = vmax.f32 %v209, 0.0
    %v264 = vmax.f32 %v211, 0.0
    %v265 = vmax.f32 %v215, 0.0
    %v266 = vmax.f32 %v217, 0.0
    %v267 = vmax.f32 %v221, 0.0
    %v268 = vmax.f32 %v223, 0.0
    %v269 = vmax.f32 %v227, 0.0
    %v270 = vmax.f32 %v229, 0.0
    %v271 = vmax.f32 %v233, 0.0
    %v272 = vmax.f32 %v235, 0.0
    %v273 = vmax.f32 %v239, 0.0
    %v274 = vmax.f32 %v241, 0.0
    %v275 = vld [vmem:[%s2] sm:$0x1]
    %276 = vmatprep.subr.mxu0 %v244
    %277 = vmatpush1.msra.mxu0 %v243
    %278 = vmatprep.subr.mxu0 %v246
    %279 = vmatpush1.msra.mxu0 %v245
    %280 = vmatprep.subr.mxu0 %v248
    %281 = vmatpush1.msra.mxu0 %v247
    %282 = vmatprep.subr.mxu0 %v250
    %283 = vmatpush1.msra.mxu0 %v249
    %284 = vmatprep.subr.mxu0 %v252
    %285 = vmatpush1.msra.mxu0 %v251
    %286 = vmatprep.subr.mxu0 %v254
    %287 = vmatpush1.msra.mxu0 %v253
    %288 = vmatprep.subr.mxu0 %v256
    %289 = vmatpush1.msra.mxu0 %v255
    %290 = vmatprep.subr.mxu0 %v258
    %291 = vmatpush1.msra.mxu0 %v257
    %292 = vmatprep.subr.mxu0 %v260
    %293 = vmatpush1.msra.mxu0 %v259
    %294 = vmatprep.subr.mxu0 %v262
    %295 = vmatpush1.msra.mxu0 %v261
    %296 = vmatprep.subr.mxu0 %v264
    %297 = vmatpush1.msra.mxu0 %v263
    %298 = vmatprep.subr.mxu0 %v266
    %299 = vmatpush1.msra.mxu0 %v265
    %300 = vmatprep.subr.mxu0 %v268
    %301 = vmatpush1.msra.mxu0 %v267
    %302 = vmatprep.subr.mxu0 %v270
    %303 = vmatpush1.msra.mxu0 %v269
    %304 = vmatprep.subr.mxu0 %v272
    %305 = vmatpush1.msra.mxu0 %v271
    %306 = vmatprep.subr.mxu0 %v274
    %307 = vmatpush1.msra.mxu0 %v273
    %308 = vmatprep.subr.mxu0 0.0
    %309 = vmatpush1.msra.mxu0 0.0
    %310 = vmatprep.subr.mxu0 0.0
    %311 = vmatpush1.msra.mxu0 0.0
    %312 = vmatprep.subr.mxu0 0.0
    %313 = vmatpush1.msra.mxu0 0.0
    %314 = vmatprep.subr.mxu0 0.0
    %315 = vmatpush1.msra.mxu0 0.0
    %316 = vmatprep.subr.mxu0 0.0
    %317 = vmatpush1.msra.mxu0 0.0
    %318 = vmatprep.subr.mxu0 0.0
    %319 = vmatpush1.msra.mxu0 0.0
    %320 = vmatprep.subr.mxu0 0.0
    %321 = vmatpush1.msra.mxu0 0.0
    %322 = vmatprep.subr.mxu0 0.0
    %323 = vmatpush1.msra.mxu0 0.0
    %324 = vmatprep.subr.mxu0 0.0
    %325 = vmatpush1.msra.mxu0 0.0
    %326 = vmatprep.subr.mxu0 0.0
    %327 = vmatpush1.msra.mxu0 0.0
    %328 = vmatprep.subr.mxu0 0.0
    %329 = vmatpush1.msra.mxu0 0.0
    %330 = vmatprep.subr.mxu0 0.0
    %331 = vmatpush1.msra.mxu0 0.0
    %332 = vmatprep.subr.mxu0 0.0
    %333 = vmatpush1.msra.mxu0 0.0
    %334 = vmatprep.subr.mxu0 0.0
    %335 = vmatpush1.msra.mxu0 0.0
    %336 = vmatprep.subr.mxu0 0.0
    %337 = vmatpush1.msra.mxu0 0.0
    %338 = vmatprep.subr.mxu0 0.0
    %339 = vmatpush1.msra.mxu0 0.0
    %340 = vmatprep.mubr.f32.mxu0 0.0
    %341 = vmatmul.mubr.f32.gmra.mrb[0].mxu0 %v275
    %v342 = vpop.f32.mrb[0].mxu0
    %v343 = vadd.f32 0.0, %v342
    %v344 = vpop.f32.mrb[0].mxu0
    %v345 = vadd.f32 0.0, %v344
    %346 = vdwg.mxu0
    %v347 = vmul.f32 %v343, 1.442695
    %v348 = vpow.pop %v347
    %v349 = vmul.f32 %v345, 1.442695
    %v350 = vpow.pop %v349
    %v353 = vcombine.low %v348, %v350
    %v355 = vunpack.c.l.s4 1966171168
    %v356 = vunpack.c.0.s8 %v355
    %v357 = vlaneseq
    %v358 = vshrl.u32 %v357, 7
    %v359 = vsub.s32 %v356, %v358
    %v360 = vrot.slane %v353, %v359
    %v362 = vunpack.c.l.s4 1966171168
    %v363 = vunpack.c.0.s8 %v362
    %v364 = vlaneseq
    %v365 = vshrl.u32 %v364, 7
    %v366 = vsub.s32 %v363, %v365
    %v367 = vrot.slane %v360, %v366
    %v369 = vlaneseq
    %vm370 = vcmp.ge.s32.totalorder %v369, 0
    %vm371 = vcmp.lt.s32.totalorder %v369, 256
    %vm372 = vmand %vm370, %vm371
    %373 = vst.msk [vmem:[#allocation2] sm:$0x3] %vm372, %v367
    // Predicated region
    $region14: #{tpu_custom_call.1} parent=1 // pred_check
      _
    $region15: #{tpu_custom_call.1} parent=1 // pred_check_branch
      %375 = sbr.rel (0) target = $region17
    $region16: #{tpu_custom_call.1} parent=1 // pred_region
      %s377 = ssub.s32 32, 32
      %378 = vsyncadd [#allocation3], %s377
      %s380 = sshll.u32 [#allocation2], 4
      %s381 = int_to_ptr.vmem [resolvable:$true] %s380
      %383 = dma.vmem_to_hbm [thread:$0]  %s381, 32, %s3, [#allocation3]
    $region17: #{tpu_custom_call.1} parent=1 // pred_fallthru
      _
    // Predicated region
    $region18: #{tpu_custom_call.1} parent=1 // pred_check
      _
    $region19: #{tpu_custom_call.1} parent=1 // pred_check_branch
      %385 = sbr.rel (0) target = $region21
    $region20: #{tpu_custom_call.1} parent=1 // pred_region
      %386 = dma.done [#allocation3], 32
    $region21: #{tpu_custom_call.1} parent=1 // pred_fallthru
      _
    %387 = vsyncpa [#allocation3], 1

</llo_original>
